<compile_context>
chip_gen: v7x
topology: tpu7x:2x2x1
jax: 0.10.0
libtpu: 0.0.40
codegen_flags: <defaults>
</compile_context>

<pallas_src>
import functools

import jax
import jax.numpy as jnp
from jax.experimental import pallas as pl
from jax.experimental.pallas import tpu as pltpu

_LANES = 128


def _masked_prob_loss_kernel(means_ref, targets_ref, cout_ref, sum_ref, cnt_ref,
                             *, rows_valid, mask_needed):
    steps = pl.num_programs(1)
    split = pl.program_id(0)
    k = pl.program_id(1)

    # sum_ref / cnt_ref are lane-dense accumulators resident in VMEM across
    # the reduction ("arbitrary") axis; zero them at the first step of a split.
    @pl.when(k == 0)
    def _():
        sum_ref[...] = jnp.zeros_like(sum_ref)
        cnt_ref[...] = jnp.zeros_like(cnt_ref)

    tile_rows = means_ref.shape[0]
    acc_rows = sum_ref.shape[0]
    n_chunks = tile_rows // acc_rows
    tile_idx = split * steps + k          # logical (unclamped) tile index

    def chunk(r0):
        sl = (pl.ds(r0, acc_rows), slice(None))
        # Upcast in-register (required on v5e which has no bf16 VALU).
        t = targets_ref[sl].astype(jnp.float32)
        m = means_ref[sl].astype(jnp.float32)
        c = cout_ref[sl].astype(jnp.float32)

        valid = t > 0.0
        if mask_needed:
            # Partial last tile / duplicated overflow tile: OOB rows of the
            # block are unspecified, so AND a row-bounds check into the mask.
            row = (jax.lax.broadcasted_iota(jnp.int32, (acc_rows, _LANES), 0)
                   + tile_idx * tile_rows + r0)
            valid = jnp.logical_and(valid, row < rows_valid)

        d = t - m
        # Keep the select (NOT mask-multiply): log of garbage/non-positive
        # cout on masked lanes must be selected away, not multiplied by 0.
        val = jnp.where(valid, c * (d * d) - jnp.log(c + 1e-16), 0.0)
        sum_ref[...] += val
        cnt_ref[...] += valid.astype(jnp.float32)

    if n_chunks <= 8:
        for i in range(n_chunks):          # static unroll (n_chunks is static)
            chunk(i * acc_rows)
    else:
        def body(i, carry):
            chunk(pl.multiple_of(i * acc_rows, acc_rows))
            return carry
        jax.lax.fori_loop(0, n_chunks, body, 0)


@functools.partial(jax.jit, static_argnames=("tile_rows",))
def masked_prob_loss(means, targets, cout, *, tile_rows=None):
    assert means.shape == targets.shape == cout.shape
    n = means.size

    itemsizes = [means.dtype.itemsize, targets.dtype.itemsize, cout.dtype.itemsize]
    if tile_rows is None:
        # Dtype-aware default: same ~1 MiB per input tile regardless of width.
        tile_rows = 4096 if max(itemsizes) <= 2 else 2048
    sub_mult = {1: 32, 2: 16}.get(min(itemsizes), 8)

    rows = pl.cdiv(n, _LANES)
    lane_pad = rows * _LANES - n
    if lane_pad:
        # Only genuinely lane-ragged sizes pay a pad copy; round rows up to
        # the sublane packing multiple while we're at it.  Padded targets == 0
        # -> masked out by the `targets > 0` test inside the kernel.
        rows = pl.cdiv(rows, sub_mult) * sub_mult
        lane_pad = rows * _LANES - n

    # Tile rows: multiple of 64 (divisible by every dtype's sublane packing
    # and by the 64-row accumulator chunk).  Tiny slabs use a single block
    # equal to the full array dims.
    if rows < 64:
        tr, acc_rows = rows, rows
    else:
        tr = max(64, (min(tile_rows, rows) // 64) * 64)
        acc_rows = 64

    real_tiles = pl.cdiv(rows, tr)
    # Always 2-way split the tile range when possible so multi-TensorCore
    # parts (v7x / megacore) can shard the "parallel" axis; single-TC chips
    # just iterate it.  Odd tile counts get one clamped, fully-masked tile.
    nsplits = 2 if real_tiles >= 2 else 1
    steps = pl.cdiv(real_tiles, nsplits)
    padded_tiles = nsplits * steps
    mask_needed = (rows % tr != 0) or (padded_tiles != real_tiles)

    def to_slab(x):
        flat = x.reshape(-1)
        if lane_pad:
            flat = jnp.pad(flat, (0, lane_pad))
        return flat.reshape(rows, _LANES)

    m2, t2, c2 = to_slab(means), to_slab(targets), to_slab(cout)

    last_block = real_tiles - 1
    if padded_tiles == real_tiles:
        def tile_map(s, k):
            return (s * steps + k, 0)
    else:
        def tile_map(s, k):
            return (jnp.minimum(s * steps + k, last_block), 0)

    tile_spec = pl.BlockSpec((tr, _LANES), tile_map)
    acc_spec = pl.BlockSpec((None, acc_rows, _LANES), lambda s, k: (s, 0, 0))

    kernel = functools.partial(
        _masked_prob_loss_kernel, rows_valid=rows, mask_needed=mask_needed)

    in_bytes = sum(n * it for it in itemsizes)
    out_bytes = 2 * nsplits * acc_rows * _LANES * 4
    cost = pl.CostEstimate(flops=8 * n, transcendentals=n,
                           bytes_accessed=in_bytes + out_bytes)

    total, count = pl.pallas_call(
        kernel,
        out_shape=(
            jax.ShapeDtypeStruct((nsplits, acc_rows, _LANES), jnp.float32),
            jax.ShapeDtypeStruct((nsplits, acc_rows, _LANES), jnp.float32),
        ),
        grid_spec=pltpu.PrefetchScalarGridSpec(
            num_scalar_prefetch=0,
            grid=(nsplits, steps),
            in_specs=[tile_spec, tile_spec, tile_spec],
            out_specs=(acc_spec, acc_spec),
        ),
        compiler_params=pltpu.CompilerParams(
            dimension_semantics=("parallel", "arbitrary"),
        ),
        cost_estimate=cost,
    )(m2, t2, c2)

    # Tiny final reduction + division in plain JAX (0/0 -> NaN matches torch
    # mean over an empty selection).
    return (jnp.sum(total) / jnp.sum(count)).astype(jnp.float32)


def _reference(means, targets, cout):
    means = means.astype(jnp.float32)
    targets = targets.astype(jnp.float32)
    cout = cout.astype(jnp.float32)
    valid = targets > 0.0
    val = cout * (targets - means) ** 2 - jnp.log(cout + 1e-16)
    return jnp.sum(jnp.where(valid, val, 0.0)) / jnp.sum(valid.astype(jnp.float32))


if __name__ == "__main__":
    def make(shape, dtype, seed):
        k1, k2, k3 = jax.random.split(jax.random.PRNGKey(seed), 3)
        means = jax.random.normal(k1, shape, jnp.float32).astype(dtype)
        targets = jax.random.normal(k2, shape, jnp.float32).astype(dtype)
        cout = (jax.nn.softplus(jax.random.normal(k3, shape, jnp.float32))
                + 1e-3).astype(dtype)
        return means, targets, cout

    def run_and_check(name, shape, dtype, seed, rtol, atol, **kw):
        m, t, c = make(shape, dtype, seed)
        loss = jax.block_until_ready(masked_prob_loss(m, t, c, **kw))
        ref = _reference(m, t, c)
        assert jnp.allclose(loss, ref, rtol=rtol, atol=atol), (name, loss, ref)

    # Case 1: canonical small NCHW f32 (tiny single-block, no mask, no pad).
    run_and_check("nchw_f32", (2, 4, 16, 16), jnp.float32, 0, 1e-5, 1e-5)

    # Case 2: bf16, multi-tile, 2-way split (even tile count, no mask).
    run_and_check("bf16_split", (2, 4, 64, 64), jnp.bfloat16, 1, 1e-4, 1e-4,
                  tile_rows=64)

    # Case 3: ragged element count (exercises the minimal lane-pad path).
    run_and_check("ragged", (3, 5, 7, 11), jnp.float32, 2, 1e-5, 1e-5)

    # Case 4: lane-aligned, odd tile count -> partial last tile + clamped,
    # fully-masked overflow tile on the forced 2-way split.
    run_and_check("partial_mask", (130, 128), jnp.float32, 3, 1e-5, 1e-5,
                  tile_rows=64)

    # Case 5: larger single-tile slab -> strip-mined fori_loop path.
    run_and_check("fori_path", (2, 4, 64, 256), jnp.float32, 4, 1e-4, 1e-5)

    print("KERNEL_OK")
</pallas_src>

<mosaic_0001>
module attributes {stable_mosaic.version = 11 : i64} {
  func.func @_masked_prob_loss_kernel(%arg0: i32, %arg1: i32, %arg2: memref<16x128xf32, #tpu.memory_space<vmem>>, %arg3: memref<16x128xf32, #tpu.memory_space<vmem>>, %arg4: memref<16x128xf32, #tpu.memory_space<vmem>>, %arg5: memref<1x16x128xf32, #tpu.memory_space<vmem>>, %arg6: memref<1x16x128xf32, #tpu.memory_space<vmem>>) attributes {dimension_semantics = [#tpu.dimension_semantics<parallel>, #tpu.dimension_semantics<arbitrary>], iteration_bounds = array<i64: 1, 1>, scalar_prefetch = 0 : i64, scratch_operands = 0 : i64, tpu.core_type = #tpu.core_type<tc>, window_params = [{transform_indices = @transform_0, window_bounds = array<i64: 16, 128>}, {transform_indices = @transform_1, window_bounds = array<i64: 16, 128>}, {transform_indices = @transform_2, window_bounds = array<i64: 16, 128>}, {transform_indices = @transform_3, window_bounds = array<i64: 1, 16, 128>}, {transform_indices = @transform_4, window_bounds = array<i64: 1, 16, 128>}]} {
    %c0_i32 = arith.constant 0 : i32
    %0 = arith.cmpi eq, %arg1, %c0_i32 : i32
    %1 = arith.extui %0 : i1 to i32
    %c0_i32_0 = arith.constant 0 : i32
    %2 = arith.cmpi ne, %1, %c0_i32_0 : i32
    scf.if %2 {
      %cst_20 = arith.constant 0.000000e+00 : f32
      %31 = vector.broadcast %cst_20 : f32 to vector<16x128xf32>
      %c0_21 = arith.constant 0 : index
      %c0_22 = arith.constant 0 : index
      %c0_23 = arith.constant 0 : index
      %32 = vector.load %arg5[%c0_21, %c0_22, %c0_23] : memref<1x16x128xf32, #tpu.memory_space<vmem>>, vector<1x16x128xf32>
      %33 = vector.shape_cast %32 : vector<1x16x128xf32> to vector<16x128xf32>
      %34 = vector.shape_cast %31 : vector<16x128xf32> to vector<1x16x128xf32>
      tpu.vector_store %arg5[%c0_21, %c0_22, %c0_23], %34 {strides = array<i32>} : memref<1x16x128xf32, #tpu.memory_space<vmem>>, vector<1x16x128xf32>,
      %cst_24 = arith.constant 0.000000e+00 : f32
      %35 = vector.broadcast %cst_24 : f32 to vector<16x128xf32>
      %c0_25 = arith.constant 0 : index
      %c0_26 = arith.constant 0 : index
      %c0_27 = arith.constant 0 : index
      %36 = vector.load %arg6[%c0_25, %c0_26, %c0_27] : memref<1x16x128xf32, #tpu.memory_space<vmem>>, vector<1x16x128xf32>
      %37 = vector.shape_cast %36 : vector<1x16x128xf32> to vector<16x128xf32>
      %38 = vector.shape_cast %35 : vector<16x128xf32> to vector<1x16x128xf32>
      tpu.vector_store %arg6[%c0_25, %c0_26, %c0_27], %38 {strides = array<i32>} : memref<1x16x128xf32, #tpu.memory_space<vmem>>, vector<1x16x128xf32>,
    } else {
    }
    %c0 = arith.constant 0 : index
    %c0_1 = arith.constant 0 : index
    %3 = vector.load %arg3[%c0, %c0_1] : memref<16x128xf32, #tpu.memory_space<vmem>>, vector<16x128xf32>
    %c0_2 = arith.constant 0 : index
    %c0_3 = arith.constant 0 : index
    %4 = vector.load %arg2[%c0_2, %c0_3] : memref<16x128xf32, #tpu.memory_space<vmem>>, vector<16x128xf32>
    %c0_4 = arith.constant 0 : index
    %c0_5 = arith.constant 0 : index
    %5 = vector.load %arg4[%c0_4, %c0_5] : memref<16x128xf32, #tpu.memory_space<vmem>>, vector<16x128xf32>
    %cst = arith.constant 0.000000e+00 : f32
    %6 = vector.broadcast %cst : f32 to vector<16x128xf32>
    %7 = arith.cmpf ogt, %3, %6 : vector<16x128xf32>
    %8 = arith.subf %3, %4 : vector<16x128xf32>
    %9 = arith.mulf %8, %8 : vector<16x128xf32>
    %10 = arith.mulf %5, %9 : vector<16x128xf32>
    %cst_6 = arith.constant 1.000000e-16 : f32
    %11 = vector.broadcast %cst_6 : f32 to vector<16x128xf32>
    %12 = arith.addf %5, %11 : vector<16x128xf32>
    %13 = math.log %12 : vector<16x128xf32>
    %14 = arith.subf %10, %13 : vector<16x128xf32>
    %cst_7 = arith.constant 0.000000e+00 : f32
    %15 = vector.broadcast %cst_7 : f32 to vector<16x128xf32>
    %16 = arith.select %7, %14, %15 : vector<16x128xi1>, vector<16x128xf32>
    %c0_8 = arith.constant 0 : index
    %c0_9 = arith.constant 0 : index
    %c0_10 = arith.constant 0 : index
    %17 = vector.load %arg5[%c0_8, %c0_9, %c0_10] : memref<1x16x128xf32, #tpu.memory_space<vmem>>, vector<1x16x128xf32>
    %18 = vector.shape_cast %17 : vector<1x16x128xf32> to vector<16x128xf32>
    %19 = arith.addf %18, %16 : vector<16x128xf32>
    %c0_11 = arith.constant 0 : index
    %c0_12 = arith.constant 0 : index
    %c0_13 = arith.constant 0 : index
    %20 = vector.load %arg5[%c0_11, %c0_12, %c0_13] : memref<1x16x128xf32, #tpu.memory_space<vmem>>, vector<1x16x128xf32>
    %21 = vector.shape_cast %20 : vector<1x16x128xf32> to vector<16x128xf32>
    %22 = vector.shape_cast %19 : vector<16x128xf32> to vector<1x16x128xf32>
    tpu.vector_store %arg5[%c0_11, %c0_12, %c0_13], %22 {strides = array<i32>} : memref<1x16x128xf32, #tpu.memory_space<vmem>>, vector<1x16x128xf32>,
    %c0_14 = arith.constant 0 : index
    %c0_15 = arith.constant 0 : index
    %c0_16 = arith.constant 0 : index
    %23 = vector.load %arg6[%c0_14, %c0_15, %c0_16] : memref<1x16x128xf32, #tpu.memory_space<vmem>>, vector<1x16x128xf32>
    %24 = vector.shape_cast %23 : vector<1x16x128xf32> to vector<16x128xf32>
    %25 = arith.extui %7 : vector<16x128xi1> to vector<16x128xi32>
    %26 = arith.sitofp %25 : vector<16x128xi32> to vector<16x128xf32>
    %27 = arith.addf %24, %26 : vector<16x128xf32>
    %c0_17 = arith.constant 0 : index
    %c0_18 = arith.constant 0 : index
    %c0_19 = arith.constant 0 : index
    %28 = vector.load %arg6[%c0_17, %c0_18, %c0_19] : memref<1x16x128xf32, #tpu.memory_space<vmem>>, vector<1x16x128xf32>
    %29 = vector.shape_cast %28 : vector<1x16x128xf32> to vector<16x128xf32>
    %30 = vector.shape_cast %27 : vector<16x128xf32> to vector<1x16x128xf32>
    tpu.vector_store %arg6[%c0_17, %c0_18, %c0_19], %30 {strides = array<i32>} : memref<1x16x128xf32, #tpu.memory_space<vmem>>, vector<1x16x128xf32>,
    return
  }
  func.func @transform_0(%arg0: i32, %arg1: i32) -> (i32, i32) {
    %c1_i32 = arith.constant 1 : i32
    %0 = arith.muli %arg0, %c1_i32 : i32
    %1 = arith.addi %0, %arg1 : i32
    %c0_i32 = arith.constant 0 : i32
    %c0_i32_0 = arith.constant 0 : i32
    return %1, %c0_i32 : i32, i32
  }
  func.func @transform_1(%arg0: i32, %arg1: i32) -> (i32, i32) {
    %c1_i32 = arith.constant 1 : i32
    %0 = arith.muli %arg0, %c1_i32 : i32
    %1 = arith.addi %0, %arg1 : i32
    %c0_i32 = arith.constant 0 : i32
    %c0_i32_0 = arith.constant 0 : i32
    return %1, %c0_i32 : i32, i32
  }
  func.func @transform_2(%arg0: i32, %arg1: i32) -> (i32, i32) {
    %c1_i32 = arith.constant 1 : i32
    %0 = arith.muli %arg0, %c1_i32 : i32
    %1 = arith.addi %0, %arg1 : i32
    %c0_i32 = arith.constant 0 : i32
    %c0_i32_0 = arith.constant 0 : i32
    return %1, %c0_i32 : i32, i32
  }
  func.func @transform_3(%arg0: i32, %arg1: i32) -> (i32, i32, i32) {
    %c0_i32 = arith.constant 0 : i32
    %c0_i32_0 = arith.constant 0 : i32
    %c0_i32_1 = arith.constant 0 : i32
    return %arg0, %c0_i32, %c0_i32_0 : i32, i32, i32
  }
  func.func @transform_4(%arg0: i32, %arg1: i32) -> (i32, i32, i32) {
    %c0_i32 = arith.constant 0 : i32
    %c0_i32_0 = arith.constant 0 : i32
    %c0_i32_1 = arith.constant 0 : i32
    return %arg0, %c0_i32, %c0_i32_0 : i32, i32, i32
  }
}

</mosaic_0001>

<llo_original>
// kernel: masked_prob_loss.1
$region0: #{masked_prob_loss.1}
  #allocation0 [shape = 'u32[]', space=smem, size = 0x4, offset = 0x4, fixed_abs, tag = 'smem constant byte address 0x4 - core index']
  #allocation1 [shape = 'u32[144,128]{1,0:T(1,128)}', space=vmem, size = 0x12000, scoped, tag = 'internal scratch']
  %s0 = inlined_call_operand.vmem [shape: f32[16,128], index: 0, kind: input, shape index: {}]
  %s1 = inlined_call_operand.vmem [shape: f32[16,128], index: 1, kind: input, shape index: {}]
  %s2 = inlined_call_operand.vmem [shape: f32[16,128], index: 2, kind: input, shape index: {}]
  %s3 = inlined_call_operand.vmem [shape: f32[1,16,128], index: 3, kind: output, shape index: {0}]
  %s4 = inlined_call_operand.vmem [shape: f32[1,16,128], index: 4, kind: output, shape index: {1}]
  %5 = xla_tuple %s3, %s4
  %s6 = sld [smem:[#allocation0]]
  $region34: #{masked_prob_loss.1} parent=0
    _
  %s8 = ssub.s32 1, %s6
  %s9 = scalar_select 0, %s8, %s6
  // Predicated region
  $region2: #{masked_prob_loss.1} parent=0 // pred_check
    _
  $region3: #{masked_prob_loss.1} parent=0 // pred_check_branch
    %11 = sbr.rel (0) target = $region5
  $region4: #{masked_prob_loss.1} parent=0 // pred_region
    %s12 = sadd.s32 0, 0
    %s13 = smul.u32 2, %s12
    %p14 = scmp.lt.s32.totalorder %s13, 1
    %s15 = scalar_select %p14, %s13, 1
    %s16 = smul.addr %s15, 8
    %s17 = scalar_lea.vmem %s0, %s16
    %s18 = sadd.s32 0, 0
    %s19 = smul.u32 2, %s18
  $region5: #{masked_prob_loss.1} parent=0 // pred_fallthru
    _
  // Predicated region
  $region6: #{masked_prob_loss.1} parent=0 // pred_check
    _
  $region7: #{masked_prob_loss.1} parent=0 // pred_check_branch
    %21 = sbr.rel (0) target = $region9
  $region8: #{masked_prob_loss.1} parent=0 // pred_region
    %s22 = sadd.s32 0, 0
    %s23 = smul.u32 2, %s22
    %p24 = scmp.lt.s32.totalorder %s23, 1
    %s25 = scalar_select %p24, %s23, 1
    %s26 = smul.addr %s25, 8
    %s27 = scalar_lea.vmem %s1, %s26
    %s28 = sadd.s32 0, 0
    %s29 = smul.u32 2, %s28
  $region9: #{masked_prob_loss.1} parent=0 // pred_fallthru
    _
  // Predicated region
  $region10: #{masked_prob_loss.1} parent=0 // pred_check
    _
  $region11: #{masked_prob_loss.1} parent=0 // pred_check_branch
    %31 = sbr.rel (0) target = $region13
  $region12: #{masked_prob_loss.1} parent=0 // pred_region
    %s32 = sadd.s32 0, 0
    %s33 = smul.u32 2, %s32
    %p34 = scmp.lt.s32.totalorder %s33, 1
    %s35 = scalar_select %p34, %s33, 1
    %s36 = smul.addr %s35, 8
    %s37 = scalar_lea.vmem %s2, %s36
    %s38 = sadd.s32 0, 0
    %s39 = smul.u32 2, %s38
  $region13: #{masked_prob_loss.1} parent=0 // pred_fallthru
    _
  %s40 = sadd.s32 0, 0
  %s41 = smul.u32 2, %s40
  %p42 = scmp.lt.s32.totalorder %s41, 1
  %s43 = scalar_select %p42, %s41, 1
  %s44 = smul.addr %s43, 8
  %s45 = scalar_lea.vmem %s0, %s44
  %s46 = sadd.s32 0, 0
  %s47 = smul.u32 2, %s46
  %p48 = scmp.lt.s32.totalorder %s47, 1
  %s49 = scalar_select %p48, %s47, 1
  %s50 = smul.addr %s49, 8
  %s51 = scalar_lea.vmem %s1, %s50
  %s52 = sadd.s32 0, 0
  %s53 = smul.u32 2, %s52
  %p54 = scmp.lt.s32.totalorder %s53, 1
  %s55 = scalar_select %p54, %s53, 1
  %s56 = smul.addr %s55, 8
  %s57 = scalar_lea.vmem %s2, %s56
  %s58 = sadd.s32 0, 0
  %s59 = smul.u32 2, %s58
  %p60 = scmp.lt.s32.totalorder %s59, 1
  %s61 = scalar_select %p60, %s59, 1
  %s62 = smul.addr %s61, 8
  %s63 = scalar_lea.vmem %s0, %s62
  %s64 = sadd.s32 0, 0
  %s65 = smul.u32 2, %s64
  %s66 = sadd.s32 0, 0
  %s67 = smul.u32 2, %s66
  %p68 = scmp.lt.s32.totalorder %s67, 1
  %s69 = scalar_select %p68, %s67, 1
  %s70 = smul.addr %s69, 8
  %s71 = scalar_lea.vmem %s1, %s70
  %s72 = sadd.s32 0, 0
  %s73 = smul.u32 2, %s72
  %s74 = sadd.s32 0, 0
  %s75 = smul.u32 2, %s74
  %p76 = scmp.lt.s32.totalorder %s75, 1
  %s77 = scalar_select %p76, %s75, 1
  %s78 = smul.addr %s77, 8
  %s79 = scalar_lea.vmem %s2, %s78
  %s80 = sadd.s32 0, 0
  %s81 = smul.u32 2, %s80
  %p82 = scmp.eq.s32.totalorder 0, 0
  // Predicated region
  $region14: #{masked_prob_loss.1} parent=0 // pred_check
    %p83 = pneg %p82
  $region15: #{masked_prob_loss.1} parent=0 // pred_check_branch
    %85 = sbr.rel (%p83) target = $region17
  $region16: #{masked_prob_loss.1} parent=0 // pred_region
    %86 = vst [vmem:[%s3] sm:$0xff] 0.0
    %87 = vst [vmem:[%s3 + $0x8] sm:$0xff] 0.0
    %88 = vst [vmem:[%s4] sm:$0xff] 0.0
    %89 = vst [vmem:[%s4 + $0x8] sm:$0xff] 0.0
  $region17: #{masked_prob_loss.1} parent=0 // pred_fallthru
    _
  %v90 = vld [vmem:[%s71] sm:$0xff]
  %v91 = vld [vmem:[%s71 + $0x8] sm:$0xff]
  %v92 = vld [vmem:[%s63] sm:$0xff]
  %v93 = vld [vmem:[%s63 + $0x8] sm:$0xff]
  %v94 = vld [vmem:[%s79] sm:$0xff]
  %v95 = vld [vmem:[%s79 + $0x8] sm:$0xff]
  %vm96 = vcmp.gt.f32.partialorder %v90, 0.0
  %vm97 = vcmp.gt.f32.partialorder %v91, 0.0
  %v98 = vsub.f32 %v90, %v92
  %v99 = vsub.f32 %v91, %v93
  %v100 = vmul.f32 %v98, %v98
  %v101 = vmul.f32 %v99, %v99
  %v102 = vmul.f32 %v94, %v100
  %v103 = vmul.f32 %v95, %v101
  %v104 = vadd.f32 %v94, 1e-16
  %v105 = vadd.f32 %v95, 1e-16
  %v106 = vlog2.pop %v104
  %v107 = vmul.f32 %v106, 0.6931472
  %v108 = vlog2.pop %v105
  %v109 = vmul.f32 %v108, 0.6931472
  %v110 = vsub.f32 %v102, %v107
  %v111 = vsub.f32 %v103, %v109
  %v112 = vsel %vm96, %v110, 0.0
  %v113 = vsel %vm97, %v111, 0.0
  %v114 = vld [vmem:[%s3] sm:$0xff]
  %v115 = vld [vmem:[%s3 + $0x8] sm:$0xff]
  %v116 = vadd.f32 %v114, %v112
  %v117 = vadd.f32 %v115, %v113
  %118 = vst [vmem:[%s3] sm:$0xff] %v116
  %119 = vst [vmem:[%s3 + $0x8] sm:$0xff] %v117
  %v120 = vld [vmem:[%s4] sm:$0xff]
  %v121 = vld [vmem:[%s4 + $0x8] sm:$0xff]
  %v122 = vsel %vm96, 1, 0
  %v123 = vsel %vm97, 1, 0
  %v124 = vcvt.s32.f32 %v122
  %v125 = vcvt.s32.f32 %v123
  %v126 = vadd.f32 %v120, %v124
  %v127 = vadd.f32 %v121, %v125
  %128 = vst [vmem:[%s4] sm:$0xff] %v126
  %129 = vst [vmem:[%s4 + $0x8] sm:$0xff] %v127
  // Predicated region
  $region18: #{masked_prob_loss.1} parent=0 // pred_check
    _
  $region19: #{masked_prob_loss.1} parent=0 // pred_check_branch
    %131 = sbr.rel (0) target = $region21
  $region20: #{masked_prob_loss.1} parent=0 // pred_region
    _
  $region21: #{masked_prob_loss.1} parent=0 // pred_fallthru
    _
  // Predicated region
  $region22: #{masked_prob_loss.1} parent=0 // pred_check
    _
  $region23: #{masked_prob_loss.1} parent=0 // pred_check_branch
    %133 = sbr.rel (0) target = $region25
  $region24: #{masked_prob_loss.1} parent=0 // pred_region
    _
  $region25: #{masked_prob_loss.1} parent=0 // pred_fallthru
    _
  // Predicated region
  $region26: #{masked_prob_loss.1} parent=0 // pred_check
    _
  $region27: #{masked_prob_loss.1} parent=0 // pred_check_branch
    %135 = sbr.rel (0) target = $region29
  $region28: #{masked_prob_loss.1} parent=0 // pred_region
    _
  $region29: #{masked_prob_loss.1} parent=0 // pred_fallthru
    _
  // Predicated region
  $region30: #{masked_prob_loss.1} parent=0 // pred_check
    _
  $region31: #{masked_prob_loss.1} parent=0 // pred_check_branch
    %137 = sbr.rel (0) target = $region33
  $region32: #{masked_prob_loss.1} parent=0 // pred_region
    _
  $region33: #{masked_prob_loss.1} parent=0 // pred_fallthru
    _

</llo_original>
